<compile_context>
chip_gen: v6e
topology: v6e:2x2x1
jax: 0.10.0
libtpu: 0.0.40
codegen_flags: <defaults>
</compile_context>

<pallas_src>
import jax
import jax.numpy as jnp
from jax import lax
from jax.experimental import pallas as pl
from jax.experimental.pallas import tpu as pltpu


def conv_block_kernel(xp_ref, w1c_ref, w1o_ref, s1_ref, b1_ref,
                      w2_ref, s2_ref, b2_ref, bid_ref, o_ref,
                      hp2):
    # xp_ref : (H+2, W*Cin)   H-padded, lane-dense input slab (one image)
    # w1c_ref: (W*Cin, 2*W*Cout)  [conv1 center tap | 1x1 identity] weights
    # w1o_ref: (2, W*Cin, W*Cout) conv1 off-center taps (dy=0, dy=2), banded
    # w2_ref : (3, W*Cout, W*Cout) conv2 taps, banded
    # s*/b*/bid_ref: (1, W*Cout) per-channel params tiled across W
    # o_ref  : (H, W*Cout)
    # hp2    : (H+2, W*Cout) H-padded staging for conv2 input
    Hp2, _ = xp_ref.shape
    H = Hp2 - 2
    WCout = o_ref.shape[1]
    f32 = jnp.float32

    x = xp_ref[1:H + 1, :]                         # interior (unpadded) rows

    # conv1 center tap + 1x1 identity share the x operand: one MXU dot
    # against the column-concatenated weight, then a free lane split.
    yc = jnp.dot(x, w1c_ref[...], preferred_element_type=f32)   # (H, 2*WCout)
    acc1 = yc[:, :WCout]
    ident = yc[:, WCout:] + bid_ref[...]

    # conv1 off-center taps: dy is a row offset into the H-padded input,
    # dx / width padding live inside the banded weights.
    acc1 = acc1 + jnp.dot(xp_ref[0:H, :], w1o_ref[0],
                          preferred_element_type=f32)
    acc1 = acc1 + jnp.dot(xp_ref[2:H + 2, :], w1o_ref[1],
                          preferred_element_type=f32)
    # BatchNorm (eval, folded) + ReLU — scale/bias are lane-resident
    h1 = jnp.maximum(acc1 * s1_ref[...] + b1_ref[...], 0.0)     # (H, WCout)

    # ---- conv2: stage h1 into H-padded scratch; zero ONLY the two halo
    #      rows (interior is fully overwritten every step) ----
    zrow = jnp.zeros((1, WCout), f32)
    hp2[0:1, :] = zrow
    hp2[H + 1:H + 2, :] = zrow
    hp2[1:H + 1, :] = h1

    acc2 = jnp.dot(hp2[0:H, :], w2_ref[0], preferred_element_type=f32)
    acc2 = acc2 + jnp.dot(h1, w2_ref[1], preferred_element_type=f32)
    acc2 = acc2 + jnp.dot(hp2[2:H + 2, :], w2_ref[2],
                          preferred_element_type=f32)
    h2 = jnp.maximum(acc2 * s2_ref[...] + b2_ref[...], 0.0)     # (H, WCout)

    # residual add + final ReLU; lane-dense (multiple of 128) unmasked store
    o_ref[...] = jnp.maximum(h2 + ident, 0.0).astype(o_ref.dtype)


def _band_select(W):
    """(3, W, W) selector: sel[dx, wi, wo] = 1 iff wi == wo + dx - 1."""
    wi = jnp.arange(W)[:, None]
    wo = jnp.arange(W)[None, :]
    return jnp.stack([(wi == (wo + dx - 1)) for dx in range(3)]).astype(jnp.float32)


def conv_block(x, w1, s1, b1, w2, s2, b2, wid=None, bid=None):
    """x: (N, H, W, Cin) f32 NHWC.  w1/w2: (3,3,Ci,Co) HWIO.  s*/b*/bid: (Cout,).

    Returns (N, H, W, Cout) f32.  If wid is None the identity path is a plain
    skip connection (Cin must equal Cout), matching nn.Identity().
    """
    N, H, W, Cin = x.shape
    Cout = w1.shape[-1]
    WCin, WCout = W * Cin, W * Cout
    f32 = jnp.float32

    if wid is None:
        wid = jnp.eye(Cin, dtype=f32)          # nn.Identity() case (Cin == Cout)
        bid = jnp.zeros((Cout,), f32)

    # ---- wrapper-side layout plumbing (cheap XLA ops, done once) ----
    sel = _band_select(W)                                            # (3, W, W)
    # banded 3x3 weights: fold dx taps + width zero-padding into (W*Ci, W*Co)
    w1b = jnp.einsum('xab,yxio->yaibo', sel, w1.astype(f32)).reshape(3, WCin, WCout)
    w2b = jnp.einsum('xab,yxio->yaibo', sel, w2.astype(f32)).reshape(3, WCout, WCout)
    # block-diagonal 1x1-conv weight
    widb = jnp.einsum('ab,io->aibo', jnp.eye(W, dtype=f32),
                      wid.astype(f32)).reshape(WCin, WCout)
    # conv1 center tap + identity weight share the x operand: concat columns
    w1c = jnp.concatenate([w1b[1], widb], axis=1)          # (WCin, 2*WCout)
    w1o = jnp.stack([w1b[0], w1b[2]])                      # (2, WCin, WCout)

    def tile_c(v):                              # (Cout,) -> (1, W*Cout)
        return jnp.tile(v.astype(f32), W).reshape(1, WCout)

    s1t, b1t = tile_c(s1), tile_c(b1)
    s2t, b2t = tile_c(s2), tile_c(b2)
    bidt = tile_c(bid)

    # lane-dense slab + H-padding done once on the host side of the kernel
    x2d = x.astype(f32).reshape(N, H, WCin)
    x_pad = jnp.pad(x2d, ((0, 0), (1, 1), (0, 0)))          # (N, H+2, WCin)

    def full(shape):
        r = len(shape)
        return pl.BlockSpec(shape, lambda n, _r=r: (0,) * _r)

    grid_spec = pltpu.PrefetchScalarGridSpec(
        num_scalar_prefetch=0,
        grid=(N,),                                            # one step per image
        in_specs=[
            pl.BlockSpec((None, H + 2, WCin), lambda n: (n, 0, 0)),  # x (padded)
            full((WCin, 2 * WCout)),                          # [w1 center | 1x1]
            full((2, WCin, WCout)),                           # w1 off-center taps
            full((1, WCout)),                                 # bn1 scale (tiled)
            full((1, WCout)),                                 # bn1 bias  (tiled)
            full((3, WCout, WCout)),                          # w2 (banded)
            full((1, WCout)),                                 # bn2 scale
            full((1, WCout)),                                 # bn2 bias
            full((1, WCout)),                                 # 1x1 bias (tiled)
        ],
        out_specs=pl.BlockSpec((None, H, WCout), lambda n: (n, 0, 0)),
        scratch_shapes=[
            pltpu.VMEM((H + 2, WCout), f32),                  # H-padded h1 staging
        ],
    )

    out = pl.pallas_call(
        conv_block_kernel,
        out_shape=jax.ShapeDtypeStruct((N, H, WCout), f32),
        grid_spec=grid_spec,
        compiler_params=pltpu.CompilerParams(
            # batch axis is independent -> shard across TensorCores on v7x
            dimension_semantics=("parallel",)),
    )(x_pad, w1c, w1o, s1t, b1t, w2b, s2t, b2t, bidt)

    return out.reshape(N, H, W, Cout)           # free reshape back to NHWC


def reference(x, w1, s1, b1, w2, s2, b2, wid, bid):
    """Pure-JAX reference (NHWC/HWIO)."""
    dn = ('NHWC', 'HWIO', 'NHWC')

    def conv3(inp, w):
        return lax.conv_general_dilated(inp, w, (1, 1), 'SAME',
                                        dimension_numbers=dn)

    h1 = jnp.maximum(conv3(x, w1) * s1 + b1, 0.0)
    h2 = jnp.maximum(conv3(h1, w2) * s2 + b2, 0.0)
    ident = jnp.einsum('nhwi,io->nhwo', x, wid) + bid
    return jnp.maximum(h2 + ident, 0.0)


if __name__ == "__main__":
    N, H, W = 2, 16, 16
    Cin, Cout = 4, 8
    eps = 1e-5

    key = jax.random.PRNGKey(0)
    keys = jax.random.split(key, 12)

    x = jax.random.normal(keys[0], (N, H, W, Cin), jnp.float32)

    # conv weights (HWIO), deterministic synthetic init
    w1 = jax.random.normal(keys[1], (3, 3, Cin, Cout), jnp.float32) * 0.2
    w2 = jax.random.normal(keys[2], (3, 3, Cout, Cout), jnp.float32) * 0.2
    wid = jax.random.normal(keys[3], (Cin, Cout), jnp.float32) * 0.2
    bid = jax.random.normal(keys[4], (Cout,), jnp.float32) * 0.1

    # BatchNorm params (eval mode) folded into per-channel scale/bias
    def make_bn(kg, kb, km, kv):
        gamma = 1.0 + 0.1 * jax.random.normal(kg, (Cout,), jnp.float32)
        beta = 0.1 * jax.random.normal(kb, (Cout,), jnp.float32)
        mean = 0.1 * jax.random.normal(km, (Cout,), jnp.float32)
        var = jax.random.uniform(kv, (Cout,), jnp.float32, 0.5, 1.5)
        scale = gamma / jnp.sqrt(var + eps)
        bias = beta - mean * scale
        return scale, bias

    s1, b1 = make_bn(keys[5], keys[6], keys[7], keys[8])
    s2, b2 = make_bn(keys[9], keys[10], keys[11], keys[4])

    out = conv_block(x, w1, s1, b1, w2, s2, b2, wid, bid)
    out = jax.block_until_ready(out)

    ref = reference(x, w1, s1, b1, w2, s2, b2, wid, bid)
    assert out.shape == (N, H, W, Cout)
    assert jnp.allclose(out, ref, atol=2e-4, rtol=2e-4), (
        float(jnp.max(jnp.abs(out - ref))))

    print("KERNEL_OK")
</pallas_src>

<mosaic_0001>
module attributes {stable_mosaic.version = 11 : i64} {
  func.func @conv_block_kernel(%arg0: i32, %arg1: memref<1x18x64xf32, #tpu.memory_space<vmem>>, %arg2: memref<64x256xf32, #tpu.memory_space<vmem>>, %arg3: memref<2x64x128xf32, #tpu.memory_space<vmem>>, %arg4: memref<1x128xf32, #tpu.memory_space<vmem>>, %arg5: memref<1x128xf32, #tpu.memory_space<vmem>>, %arg6: memref<3x128x128xf32, #tpu.memory_space<vmem>>, %arg7: memref<1x128xf32, #tpu.memory_space<vmem>>, %arg8: memref<1x128xf32, #tpu.memory_space<vmem>>, %arg9: memref<1x128xf32, #tpu.memory_space<vmem>>, %arg10: memref<1x16x128xf32, #tpu.memory_space<vmem>>, %arg11: memref<18x128xf32, #tpu.memory_space<vmem>>) attributes {dimension_semantics = [#tpu.dimension_semantics<parallel>], iteration_bounds = array<i64: 2>, scalar_prefetch = 0 : i64, scratch_operands = 1 : i64, tpu.core_type = #tpu.core_type<tc>, window_params = [{transform_indices = @transform_0, window_bounds = array<i64: 1, 18, 64>}, {pipeline_mode = #tpu.pipeline_mode<synchronous>, transform_indices = @transform_1, window_bounds = array<i64: 64, 256>}, {pipeline_mode = #tpu.pipeline_mode<synchronous>, transform_indices = @transform_2, window_bounds = array<i64: 2, 64, 128>}, {pipeline_mode = #tpu.pipeline_mode<synchronous>, transform_indices = @transform_3, window_bounds = array<i64: 1, 128>}, {pipeline_mode = #tpu.pipeline_mode<synchronous>, transform_indices = @transform_4, window_bounds = array<i64: 1, 128>}, {pipeline_mode = #tpu.pipeline_mode<synchronous>, transform_indices = @transform_5, window_bounds = array<i64: 3, 128, 128>}, {pipeline_mode = #tpu.pipeline_mode<synchronous>, transform_indices = @transform_6, window_bounds = array<i64: 1, 128>}, {pipeline_mode = #tpu.pipeline_mode<synchronous>, transform_indices = @transform_7, window_bounds = array<i64: 1, 128>}, {pipeline_mode = #tpu.pipeline_mode<synchronous>, transform_indices = @transform_8, window_bounds = array<i64: 1, 128>}, {transform_indices = @transform_9, window_bounds = array<i64: 1, 16, 128>}]} {
    %c0 = arith.constant 0 : index
    %c1 = arith.constant 1 : index
    %c0_0 = arith.constant 0 : index
    %0 = vector.load %arg1[%c0, %c1, %c0_0] : memref<1x18x64xf32, #tpu.memory_space<vmem>>, vector<1x16x64xf32>
    %1 = vector.shape_cast %0 : vector<1x16x64xf32> to vector<16x64xf32>
    %c0_1 = arith.constant 0 : index
    %c0_2 = arith.constant 0 : index
    %2 = vector.load %arg2[%c0_1, %c0_2] : memref<64x256xf32, #tpu.memory_space<vmem>>, vector<64x256xf32>
    %cst = arith.constant dense<0.000000e+00> : vector<16x256xf32>
    %3 = tpu.matmul %1, %2, %cst {dimension_numbers = #tpu.dot_dimension_numbers<[1], [0], [0], [1], [0, 0, 1, 1], [], []>} : vector<16x64xf32>, vector<64x256xf32>, vector<16x256xf32> -> vector<16x256xf32>
    %4 = vector.extract_strided_slice %3 {offsets = [0, 0], sizes = [16, 128], strides = [1, 1]} : vector<16x256xf32> to vector<16x128xf32>
    %5 = vector.extract_strided_slice %3 {offsets = [0, 128], sizes = [16, 128], strides = [1, 1]} : vector<16x256xf32> to vector<16x128xf32>
    %c0_3 = arith.constant 0 : index
    %c0_4 = arith.constant 0 : index
    %6 = vector.load %arg9[%c0_3, %c0_4] : memref<1x128xf32, #tpu.memory_space<vmem>>, vector<1x128xf32>
    %7 = vector.broadcast %6 : vector<1x128xf32> to vector<16x128xf32>
    %8 = arith.addf %5, %7 : vector<16x128xf32>
    %c0_5 = arith.constant 0 : index
    %c0_6 = arith.constant 0 : index
    %c0_7 = arith.constant 0 : index
    %9 = vector.load %arg1[%c0_5, %c0_6, %c0_7] : memref<1x18x64xf32, #tpu.memory_space<vmem>>, vector<1x16x64xf32>
    %10 = vector.shape_cast %9 : vector<1x16x64xf32> to vector<16x64xf32>
    %c0_8 = arith.constant 0 : index
    %c0_9 = arith.constant 0 : index
    %c0_10 = arith.constant 0 : index
    %11 = vector.load %arg3[%c0_8, %c0_9, %c0_10] : memref<2x64x128xf32, #tpu.memory_space<vmem>>, vector<1x64x128xf32>
    %12 = vector.shape_cast %11 : vector<1x64x128xf32> to vector<64x128xf32>
    %cst_11 = arith.constant dense<0.000000e+00> : vector<16x128xf32>
    %13 = tpu.matmul %10, %12, %cst_11 {dimension_numbers = #tpu.dot_dimension_numbers<[1], [0], [0], [1], [0, 0, 1, 1], [], []>} : vector<16x64xf32>, vector<64x128xf32>, vector<16x128xf32> -> vector<16x128xf32>
    %14 = arith.addf %4, %13 : vector<16x128xf32>
    %c0_12 = arith.constant 0 : index
    %c2 = arith.constant 2 : index
    %c0_13 = arith.constant 0 : index
    %15 = vector.load %arg1[%c0_12, %c2, %c0_13] : memref<1x18x64xf32, #tpu.memory_space<vmem>>, vector<1x16x64xf32>
    %16 = vector.shape_cast %15 : vector<1x16x64xf32> to vector<16x64xf32>
    %c1_14 = arith.constant 1 : index
    %c0_15 = arith.constant 0 : index
    %c0_16 = arith.constant 0 : index
    %17 = vector.load %arg3[%c1_14, %c0_15, %c0_16] : memref<2x64x128xf32, #tpu.memory_space<vmem>>, vector<1x64x128xf32>
    %18 = vector.shape_cast %17 : vector<1x64x128xf32> to vector<64x128xf32>
    %cst_17 = arith.constant dense<0.000000e+00> : vector<16x128xf32>
    %19 = tpu.matmul %16, %18, %cst_17 {dimension_numbers = #tpu.dot_dimension_numbers<[1], [0], [0], [1], [0, 0, 1, 1], [], []>} : vector<16x64xf32>, vector<64x128xf32>, vector<16x128xf32> -> vector<16x128xf32>
    %20 = arith.addf %14, %19 : vector<16x128xf32>
    %c0_18 = arith.constant 0 : index
    %c0_19 = arith.constant 0 : index
    %21 = vector.load %arg4[%c0_18, %c0_19] : memref<1x128xf32, #tpu.memory_space<vmem>>, vector<1x128xf32>
    %22 = vector.broadcast %21 : vector<1x128xf32> to vector<16x128xf32>
    %23 = arith.mulf %20, %22 : vector<16x128xf32>
    %c0_20 = arith.constant 0 : index
    %c0_21 = arith.constant 0 : index
    %24 = vector.load %arg5[%c0_20, %c0_21] : memref<1x128xf32, #tpu.memory_space<vmem>>, vector<1x128xf32>
    %25 = vector.broadcast %24 : vector<1x128xf32> to vector<16x128xf32>
    %26 = arith.addf %23, %25 : vector<16x128xf32>
    %cst_22 = arith.constant 0.000000e+00 : f32
    %27 = vector.broadcast %cst_22 : f32 to vector<16x128xf32>
    %28 = arith.maximumf %26, %27 : vector<16x128xf32>
    %cst_23 = arith.constant 0.000000e+00 : f32
    %29 = vector.broadcast %cst_23 : f32 to vector<1x128xf32>
    %c0_24 = arith.constant 0 : index
    %c0_25 = arith.constant 0 : index
    %30 = vector.load %arg11[%c0_24, %c0_25] : memref<18x128xf32, #tpu.memory_space<vmem>>, vector<1x128xf32>
    tpu.vector_store %arg11[%c0_24, %c0_25], %29 {strides = array<i32>} : memref<18x128xf32, #tpu.memory_space<vmem>>, vector<1x128xf32>,
    %c17 = arith.constant 17 : index
    %c0_26 = arith.constant 0 : index
    %31 = vector.load %arg11[%c17, %c0_26] : memref<18x128xf32, #tpu.memory_space<vmem>>, vector<1x128xf32>
    tpu.vector_store %arg11[%c17, %c0_26], %29 {strides = array<i32>} : memref<18x128xf32, #tpu.memory_space<vmem>>, vector<1x128xf32>,
    %c1_27 = arith.constant 1 : index
    %c0_28 = arith.constant 0 : index
    %32 = vector.load %arg11[%c1_27, %c0_28] : memref<18x128xf32, #tpu.memory_space<vmem>>, vector<16x128xf32>
    tpu.vector_store %arg11[%c1_27, %c0_28], %28 {strides = array<i32>} : memref<18x128xf32, #tpu.memory_space<vmem>>, vector<16x128xf32>,
    %c0_29 = arith.constant 0 : index
    %c0_30 = arith.constant 0 : index
    %33 = vector.load %arg11[%c0_29, %c0_30] : memref<18x128xf32, #tpu.memory_space<vmem>>, vector<16x128xf32>
    %c0_31 = arith.constant 0 : index
    %c0_32 = arith.constant 0 : index
    %c0_33 = arith.constant 0 : index
    %34 = vector.load %arg6[%c0_31, %c0_32, %c0_33] : memref<3x128x128xf32, #tpu.memory_space<vmem>>, vector<1x128x128xf32>
    %35 = vector.shape_cast %34 : vector<1x128x128xf32> to vector<128x128xf32>
    %cst_34 = arith.constant dense<0.000000e+00> : vector<16x128xf32>
    %36 = tpu.matmul %33, %35, %cst_34 {dimension_numbers = #tpu.dot_dimension_numbers<[1], [0], [0], [1], [0, 0, 1, 1], [], []>} : vector<16x128xf32>, vector<128x128xf32>, vector<16x128xf32> -> vector<16x128xf32>
    %c1_35 = arith.constant 1 : index
    %c0_36 = arith.constant 0 : index
    %c0_37 = arith.constant 0 : index
    %37 = vector.load %arg6[%c1_35, %c0_36, %c0_37] : memref<3x128x128xf32, #tpu.memory_space<vmem>>, vector<1x128x128xf32>
    %38 = vector.shape_cast %37 : vector<1x128x128xf32> to vector<128x128xf32>
    %cst_38 = arith.constant dense<0.000000e+00> : vector<16x128xf32>
    %39 = tpu.matmul %28, %38, %cst_38 {dimension_numbers = #tpu.dot_dimension_numbers<[1], [0], [0], [1], [0, 0, 1, 1], [], []>} : vector<16x128xf32>, vector<128x128xf32>, vector<16x128xf32> -> vector<16x128xf32>
    %40 = arith.addf %36, %39 : vector<16x128xf32>
    %c2_39 = arith.constant 2 : index
    %c0_40 = arith.constant 0 : index
    %41 = vector.load %arg11[%c2_39, %c0_40] : memref<18x128xf32, #tpu.memory_space<vmem>>, vector<16x128xf32>
    %c2_41 = arith.constant 2 : index
    %c0_42 = arith.constant 0 : index
    %c0_43 = arith.constant 0 : index
    %42 = vector.load %arg6[%c2_41, %c0_42, %c0_43] : memref<3x128x128xf32, #tpu.memory_space<vmem>>, vector<1x128x128xf32>
    %43 = vector.shape_cast %42 : vector<1x128x128xf32> to vector<128x128xf32>
    %cst_44 = arith.constant dense<0.000000e+00> : vector<16x128xf32>
    %44 = tpu.matmul %41, %43, %cst_44 {dimension_numbers = #tpu.dot_dimension_numbers<[1], [0], [0], [1], [0, 0, 1, 1], [], []>} : vector<16x128xf32>, vector<128x128xf32>, vector<16x128xf32> -> vector<16x128xf32>
    %45 = arith.addf %40, %44 : vector<16x128xf32>
    %c0_45 = arith.constant 0 : index
    %c0_46 = arith.constant 0 : index
    %46 = vector.load %arg7[%c0_45, %c0_46] : memref<1x128xf32, #tpu.memory_space<vmem>>, vector<1x128xf32>
    %47 = vector.broadcast %46 : vector<1x128xf32> to vector<16x128xf32>
    %48 = arith.mulf %45, %47 : vector<16x128xf32>
    %c0_47 = arith.constant 0 : index
    %c0_48 = arith.constant 0 : index
    %49 = vector.load %arg8[%c0_47, %c0_48] : memref<1x128xf32, #tpu.memory_space<vmem>>, vector<1x128xf32>
    %50 = vector.broadcast %49 : vector<1x128xf32> to vector<16x128xf32>
    %51 = arith.addf %48, %50 : vector<16x128xf32>
    %cst_49 = arith.constant 0.000000e+00 : f32
    %52 = vector.broadcast %cst_49 : f32 to vector<16x128xf32>
    %53 = arith.maximumf %51, %52 : vector<16x128xf32>
    %54 = arith.addf %53, %8 : vector<16x128xf32>
    %cst_50 = arith.constant 0.000000e+00 : f32
    %55 = vector.broadcast %cst_50 : f32 to vector<16x128xf32>
    %56 = arith.maximumf %54, %55 : vector<16x128xf32>
    %c0_51 = arith.constant 0 : index
    %c0_52 = arith.constant 0 : index
    %c0_53 = arith.constant 0 : index
    %57 = vector.load %arg10[%c0_51, %c0_52, %c0_53] : memref<1x16x128xf32, #tpu.memory_space<vmem>>, vector<1x16x128xf32>
    %58 = vector.shape_cast %57 : vector<1x16x128xf32> to vector<16x128xf32>
    %59 = vector.shape_cast %56 : vector<16x128xf32> to vector<1x16x128xf32>
    tpu.vector_store %arg10[%c0_51, %c0_52, %c0_53], %59 {strides = array<i32>} : memref<1x16x128xf32, #tpu.memory_space<vmem>>, vector<1x16x128xf32>,
    return
  }
  func.func @transform_0(%arg0: i32) -> (i32, i32, i32) {
    %c0_i32 = arith.constant 0 : i32
    %c0_i32_0 = arith.constant 0 : i32
    %c0_i32_1 = arith.constant 0 : i32
    return %arg0, %c0_i32, %c0_i32_0 : i32, i32, i32
  }
  func.func @transform_1(%arg0: i32) -> (i32, i32) {
    %c0_i32 = arith.constant 0 : i32
    %c0_i32_0 = arith.constant 0 : i32
    %c0_i32_1 = arith.constant 0 : i32
    return %c0_i32, %c0_i32_0 : i32, i32
  }
  func.func @transform_2(%arg0: i32) -> (i32, i32, i32) {
    %c0_i32 = arith.constant 0 : i32
    %c0_i32_0 = arith.constant 0 : i32
    %c0_i32_1 = arith.constant 0 : i32
    %c0_i32_2 = arith.constant 0 : i32
    return %c0_i32, %c0_i32_0, %c0_i32_1 : i32, i32, i32
  }
  func.func @transform_3(%arg0: i32) -> (i32, i32) {
    %c0_i32 = arith.constant 0 : i32
    %c0_i32_0 = arith.constant 0 : i32
    %c0_i32_1 = arith.constant 0 : i32
    return %c0_i32, %c0_i32_0 : i32, i32
  }
  func.func @transform_4(%arg0: i32) -> (i32, i32) {
    %c0_i32 = arith.constant 0 : i32
    %c0_i32_0 = arith.constant 0 : i32
    %c0_i32_1 = arith.constant 0 : i32
    return %c0_i32, %c0_i32_0 : i32, i32
  }
  func.func @transform_5(%arg0: i32) -> (i32, i32, i32) {
    %c0_i32 = arith.constant 0 : i32
    %c0_i32_0 = arith.constant 0 : i32
    %c0_i32_1 = arith.constant 0 : i32
    %c0_i32_2 = arith.constant 0 : i32
    return %c0_i32, %c0_i32_0, %c0_i32_1 : i32, i32, i32
  }
  func.func @transform_6(%arg0: i32) -> (i32, i32) {
    %c0_i32 = arith.constant 0 : i32
    %c0_i32_0 = arith.constant 0 : i32
    %c0_i32_1 = arith.constant 0 : i32
    return %c0_i32, %c0_i32_0 : i32, i32
  }
  func.func @transform_7(%arg0: i32) -> (i32, i32) {
    %c0_i32 = arith.constant 0 : i32
    %c0_i32_0 = arith.constant 0 : i32
    %c0_i32_1 = arith.constant 0 : i32
    return %c0_i32, %c0_i32_0 : i32, i32
  }
  func.func @transform_8(%arg0: i32) -> (i32, i32) {
    %c0_i32 = arith.constant 0 : i32
    %c0_i32_0 = arith.constant 0 : i32
    %c0_i32_1 = arith.constant 0 : i32
    return %c0_i32, %c0_i32_0 : i32, i32
  }
  func.func @transform_9(%arg0: i32) -> (i32, i32, i32) {
    %c0_i32 = arith.constant 0 : i32
    %c0_i32_0 = arith.constant 0 : i32
    %c0_i32_1 = arith.constant 0 : i32
    return %arg0, %c0_i32, %c0_i32_0 : i32, i32, i32
  }
}

</mosaic_0001>

<llo_original>
// kernel: tpu_custom_call.1
$region0: #{tpu_custom_call.1}
  #allocation0 [shape = 'u32[]', space=smem, size = 0x4, offset = 0x4, fixed_abs, tag = 'smem constant byte address 0x4 - core index']
  #allocation1 [shape = 'u32[144,128]{1,0:T(1,128)}', space=vmem, size = 0x12000, scoped, tag = 'internal scratch']
  #allocation2 [shape = 'f32[18,128]{1,0:T(8,128)}', space=vmem, size = 0x3000, scoped, tag = 'scratch operand']
  %s0 = inlined_call_operand.vmem [shape: f32[2,18,64], index: 0, kind: input, shape index: {}]
  %s1 = inlined_call_operand.hbm [shape: f32[64,256], index: 1, kind: input, shape index: {}]
  %s2 = inlined_call_operand.hbm [shape: f32[2,64,128], index: 2, kind: input, shape index: {}]
  %s3 = inlined_call_operand.vmem [shape: f32[1,128], index: 3, kind: input, shape index: {}]
  %s4 = inlined_call_operand.vmem [shape: f32[1,128], index: 4, kind: input, shape index: {}]
  %s5 = inlined_call_operand.hbm [shape: f32[3,128,128], index: 5, kind: input, shape index: {}]
  %s6 = inlined_call_operand.vmem [shape: f32[1,128], index: 6, kind: input, shape index: {}]
  %s7 = inlined_call_operand.vmem [shape: f32[1,128], index: 7, kind: input, shape index: {}]
  %s8 = inlined_call_operand.vmem [shape: f32[1,128], index: 8, kind: input, shape index: {}]
  %s9 = inlined_call_operand.hbm [shape: f32[2,16,128], index: 9, kind: output, shape index: {}]
  %s10 = sld [smem:[#allocation0]]
  $region81: #{tpu_custom_call.1} parent=0
    _
  %s12 = ssub.s32 1, %s10
  %s13 = scalar_select 0, %s12, %s10
  $region1: #{tpu_custom_call.1} parent=0
    #allocation3 [shape = 'u8[65536]{0}', space=vmem, size = 0x10000, scoped, tag = 'input window, operand 1, single buffered']
    #allocation4 [shape = 's32[2]{0}', space=sflag, size = 0x8, scoped, tag = 'scoped memory for tpu_custom_call.1']
    #allocation5 [shape = 's32[2]{0}', space=sflag, size = 0x8, scoped, tag = 'scoped memory for tpu_custom_call.1']
    #allocation6 [shape = 'u8[65536]{0}', space=vmem, size = 0x10000, scoped, tag = 'input window, operand 2, single buffered']
    #allocation7 [shape = 's32[1]{0}', space=sflag, size = 0x4, scoped, tag = 'scoped memory for tpu_custom_call.1']
    #allocation8 [shape = 'u8[196608]{0}', space=vmem, size = 0x30000, scoped, tag = 'input window, operand 5, single buffered']
    #allocation9 [shape = 'u8[16384]{0}', space=vmem, size = 0x4000, scoped, tag = 'output window, operand 0']
    %14 = vsyncpa [#allocation4], 0
    %15 = vsyncpa [#allocation7], 0
    %16 = vsyncpa [#allocation5], 0
    %s17 = scalar_lea.sflag [#allocation5], 1
    %18 = vsyncpa %s17, 0
    loop: start=0, step=1, limit=4
    $region2: #{tpu_custom_call.1} parent=1 // loop_pre_header
      _
    $region3: #{tpu_custom_call.1} parent=1 // loop_header
      %s20 = sphi 0, %s24
      %p21 = scmp.ge.s32.totalorder %s20, 4
      %s30 = sphi 0, %s32
      %s33 = sphi 0, %s30
      %s34 = sphi 0, %s33
      %s50 = sphi 0, %s34
      %s54 = sphi 0, %s54
      %s56 = sphi 0, %s54
      %s57 = sphi 0, %s56
      %s71 = sphi 0, %s57
      %s75 = sphi 0, %s75
      %s77 = sphi 0, %s75
      %s78 = sphi 0, %s77
      %s92 = sphi 0, %s78
      %s96 = sphi 0, %s96
      %s98 = sphi 0, %s96
      %s99 = sphi 0, %s98
      %s113 = sphi 0, %s99
      %s117 = sphi 0, %s117
      %s119 = sphi 0, %s117
      %s120 = sphi 0, %s119
      %s134 = sphi 0, %s120
      %s138 = sphi 0, %s138
      %s140 = sphi 0, %s138
      %s141 = sphi 0, %s140
      %s155 = sphi 0, %s141
      %s159 = sphi 0, %s159
      %s161 = sphi 0, %s159
      %s162 = sphi 0, %s161
      %s176 = sphi 0, %s162
      %s180 = sphi 0, %s180
      %s182 = sphi 0, %s180
      %s183 = sphi 0, %s182
      %s197 = sphi 0, %s183
      %s201 = sphi 0, %s201
      %s203 = sphi 0, %s201
      %s204 = sphi 0, %s203
      %s218 = sphi 0, %s204
      %s224 = sphi 0, %s226
      %s227 = sphi 0, %s224
      %s228 = sphi 0, %s227
      %s244 = sphi 0, %s228
    $region4: #{tpu_custom_call.1} parent=1 // loop_header_branch
      %23 = sbr.rel (%p21) target = $region8
    $region5: #{tpu_custom_call.1} parent=1 // loop_body
      %s25 = ssub.s32 %s20, 1
      %s26 = ssub.s32 %s20, 2
      %s27 = sadd.s32 %s20, 1
      %s28 = ssub.s32 %s20, %s27
      %p29 = scmp.eq.s32.totalorder %s28, 0
      %s31 = sadd.s32 %s30, 1
      %s32 = scalar_select %p29, %s30, %s31
      %p35 = pneg %p29
      %p36 = scmp.eq.s32.totalorder %s20, 1
      %p37 = por %p35, %p36
      %p38 = scmp.ne.s32.totalorder %s30, %s33
      %p39 = scmp.eq.s32.totalorder %s20, 0
      %p40 = por %p38, %p39
      %p41 = scmp.ne.s32.totalorder %s30, %s33
      %p42 = scmp.eq.s32.totalorder %s25, 1
      %p43 = por %p41, %p42
      %p44 = scmp.ne.s32.totalorder %s33, %s34
      %p45 = scmp.eq.s32.totalorder %s25, 0
      %p46 = por %p44, %p45
      %p47 = scmp.ne.s32.totalorder %s33, %s34
      %p48 = scmp.eq.s32.totalorder %s26, 1
      %p49 = por %p47, %p48
      %p51 = scmp.ne.s32.totalorder %s34, %s50
      %p52 = scmp.eq.s32.totalorder %s26, 0
      %p53 = por %p51, %p52
      %s55 = sadd.s32 %s54, 1
      %p58 = scmp.eq.s32.totalorder %s20, 1
      %p59 = scmp.ne.s32.totalorder %s54, %s56
      %p60 = scmp.eq.s32.totalorder %s20, 0
      %p61 = por %p59, %p60
      %p62 = scmp.ne.s32.totalorder %s54, %s56
      %p63 = scmp.eq.s32.totalorder %s25, 1
      %p64 = por %p62, %p63
      %p65 = scmp.ne.s32.totalorder %s56, %s57
      %p66 = scmp.eq.s32.totalorder %s25, 0
      %p67 = por %p65, %p66
      %p68 = scmp.ne.s32.totalorder %s56, %s57
      %p69 = scmp.eq.s32.totalorder %s26, 1
      %p70 = por %p68, %p69
      %p72 = scmp.ne.s32.totalorder %s57, %s71
      %p73 = scmp.eq.s32.totalorder %s26, 0
      %p74 = por %p72, %p73
      %s76 = sadd.s32 %s75, 1
      %p79 = scmp.eq.s32.totalorder %s20, 1
      %p80 = scmp.ne.s32.totalorder %s75, %s77
      %p81 = scmp.eq.s32.totalorder %s20, 0
      %p82 = por %p80, %p81
      %p83 = scmp.ne.s32.totalorder %s75, %s77
      %p84 = scmp.eq.s32.totalorder %s25, 1
      %p85 = por %p83, %p84
      %p86 = scmp.ne.s32.totalorder %s77, %s78
      %p87 = scmp.eq.s32.totalorder %s25, 0
      %p88 = por %p86, %p87
      %p89 = scmp.ne.s32.totalorder %s77, %s78
      %p90 = scmp.eq.s32.totalorder %s26, 1
      %p91 = por %p89, %p90
      %p93 = scmp.ne.s32.totalorder %s78, %s92
      %p94 = scmp.eq.s32.totalorder %s26, 0
      %p95 = por %p93, %p94
      %s97 = sadd.s32 %s96, 1
      %p100 = scmp.eq.s32.totalorder %s20, 1
      %p101 = scmp.ne.s32.totalorder %s96, %s98
      %p102 = scmp.eq.s32.totalorder %s20, 0
      %p103 = por %p101, %p102
      %p104 = scmp.ne.s32.totalorder %s96, %s98
      %p105 = scmp.eq.s32.totalorder %s25, 1
      %p106 = por %p104, %p105
      %p107 = scmp.ne.s32.totalorder %s98, %s99
      %p108 = scmp.eq.s32.totalorder %s25, 0
      %p109 = por %p107, %p108
      %p110 = scmp.ne.s32.totalorder %s98, %s99
      %p111 = scmp.eq.s32.totalorder %s26, 1
      %p112 = por %p110, %p111
      %p114 = scmp.ne.s32.totalorder %s99, %s113
      %p115 = scmp.eq.s32.totalorder %s26, 0
      %p116 = por %p114, %p115
      %s118 = sadd.s32 %s117, 1
      %p121 = scmp.eq.s32.totalorder %s20, 1
      %p122 = scmp.ne.s32.totalorder %s117, %s119
      %p123 = scmp.eq.s32.totalorder %s20, 0
      %p124 = por %p122, %p123
      %p125 = scmp.ne.s32.totalorder %s117, %s119
      %p126 = scmp.eq.s32.totalorder %s25, 1
      %p127 = por %p125, %p126
      %p128 = scmp.ne.s32.totalorder %s119, %s120
      %p129 = scmp.eq.s32.totalorder %s25, 0
      %p130 = por %p128, %p129
      %p131 = scmp.ne.s32.totalorder %s119, %s120
      %p132 = scmp.eq.s32.totalorder %s26, 1
      %p133 = por %p131, %p132
      %p135 = scmp.ne.s32.totalorder %s120, %s134
      %p136 = scmp.eq.s32.totalorder %s26, 0
      %p137 = por %p135, %p136
      %s139 = sadd.s32 %s138, 1
      %p142 = scmp.eq.s32.totalorder %s20, 1
      %p143 = scmp.ne.s32.totalorder %s138, %s140
      %p144 = scmp.eq.s32.totalorder %s20, 0
      %p145 = por %p143, %p144
      %p146 = scmp.ne.s32.totalorder %s138, %s140
      %p147 = scmp.eq.s32.totalorder %s25, 1
      %p148 = por %p146, %p147
      %p149 = scmp.ne.s32.totalorder %s140, %s141
      %p150 = scmp.eq.s32.totalorder %s25, 0
      %p151 = por %p149, %p150
      %p152 = scmp.ne.s32.totalorder %s140, %s141
      %p153 = scmp.eq.s32.totalorder %s26, 1
      %p154 = por %p152, %p153
      %p156 = scmp.ne.s32.totalorder %s141, %s155
      %p157 = scmp.eq.s32.totalorder %s26, 0
      %p158 = por %p156, %p157
      %s160 = sadd.s32 %s159, 1
      %p163 = scmp.eq.s32.totalorder %s20, 1
      %p164 = scmp.ne.s32.totalorder %s159, %s161
      %p165 = scmp.eq.s32.totalorder %s20, 0
      %p166 = por %p164, %p165
      %p167 = scmp.ne.s32.totalorder %s159, %s161
      %p168 = scmp.eq.s32.totalorder %s25, 1
      %p169 = por %p167, %p168
      %p170 = scmp.ne.s32.totalorder %s161, %s162
      %p171 = scmp.eq.s32.totalorder %s25, 0
      %p172 = por %p170, %p171
      %p173 = scmp.ne.s32.totalorder %s161, %s162
      %p174 = scmp.eq.s32.totalorder %s26, 1
      %p175 = por %p173, %p174
      %p177 = scmp.ne.s32.totalorder %s162, %s176
      %p178 = scmp.eq.s32.totalorder %s26, 0
      %p179 = por %p177, %p178
      %s181 = sadd.s32 %s180, 1
      %p184 = scmp.eq.s32.totalorder %s20, 1
      %p185 = scmp.ne.s32.totalorder %s180, %s182
      %p186 = scmp.eq.s32.totalorder %s20, 0
      %p187 = por %p185, %p186
      %p188 = scmp.ne.s32.totalorder %s180, %s182
      %p189 = scmp.eq.s32.totalorder %s25, 1
      %p190 = por %p188, %p189
      %p191 = scmp.ne.s32.totalorder %s182, %s183
      %p192 = scmp.eq.s32.totalorder %s25, 0
      %p193 = por %p191, %p192
      %p194 = scmp.ne.s32.totalorder %s182, %s183
      %p195 = scmp.eq.s32.totalorder %s26, 1
      %p196 = por %p194, %p195
      %p198 = scmp.ne.s32.totalorder %s183, %s197
      %p199 = scmp.eq.s32.totalorder %s26, 0
      %p200 = por %p198, %p199
      %s202 = sadd.s32 %s201, 1
      %p205 = scmp.eq.s32.totalorder %s20, 1
      %p206 = scmp.ne.s32.totalorder %s201, %s203
      %p207 = scmp.eq.s32.totalorder %s20, 0
      %p208 = por %p206, %p207
      %p209 = scmp.ne.s32.totalorder %s201, %s203
      %p210 = scmp.eq.s32.totalorder %s25, 1
      %p211 = por %p209, %p210
      %p212 = scmp.ne.s32.totalorder %s203, %s204
      %p213 = scmp.eq.s32.totalorder %s25, 0
      %p214 = por %p212, %p213
      %p215 = scmp.ne.s32.totalorder %s203, %s204
      %p216 = scmp.eq.s32.totalorder %s26, 1
      %p217 = por %p215, %p216
      %p219 = scmp.ne.s32.totalorder %s204, %s218
      %p220 = scmp.eq.s32.totalorder %s26, 0
      %p221 = por %p219, %p220
      %s222 = ssub.s32 %s20, %s27
      %p223 = scmp.eq.s32.totalorder %s222, 0
      %s225 = sadd.s32 %s224, 1
      %s226 = scalar_select %p223, %s224, %s225
      %p229 = pneg %p223
      %p230 = scmp.eq.s32.totalorder %s20, 1
      %p231 = por %p229, %p230
      %p232 = scmp.ne.s32.totalorder %s224, %s227
      %p233 = scmp.eq.s32.totalorder %s20, 0
      %p234 = por %p232, %p233
      %p235 = scmp.ne.s32.totalorder %s224, %s227
      %p236 = scmp.eq.s32.totalorder %s25, 1
      %p237 = por %p235, %p236
      %p238 = scmp.ne.s32.totalorder %s227, %s228
      %p239 = scmp.eq.s32.totalorder %s25, 0
      %p240 = por %p238, %p239
      %p241 = scmp.ne.s32.totalorder %s227, %s228
      %p242 = scmp.eq.s32.totalorder %s26, 1
      %p243 = por %p241, %p242
      %p245 = scmp.ne.s32.totalorder %s228, %s244
      %p246 = scmp.eq.s32.totalorder %s26, 0
      %p247 = por %p245, %p246
      %p248 = scmp.le.s32.totalorder 1, %s20
      %p249 = scmp.lt.s32.totalorder %s20, 3
      %p250 = pnand %p248, %p249
      %p251 = pneg %p250
      // Predicated region
      $region9: #{tpu_custom_call.1} parent=5 // pred_check
        _
      $region10: #{tpu_custom_call.1} parent=5 // pred_check_branch
        %253 = sbr.rel (%p250) target = $region12
      $region11: #{tpu_custom_call.1} parent=5 // pred_region
        %s254 = ssub.s32 %s20, 1
        // Predicated region
        $region13: #{tpu_custom_call.1} parent=11 // pred_check
          %p255 = pneg %p67
        $region14: #{tpu_custom_call.1} parent=11 // pred_check_branch
          %257 = sbr.rel (%p255) target = $region16
        $region15: #{tpu_custom_call.1} parent=11 // pred_region
          %s259 = ssub.s32 2048, 2048
          %260 = vsyncadd [#allocation4], %s259
          %s261 = sshll.u32 [#allocation3], 4
          %s262 = int_to_ptr.vmem [resolvable:$true] %s261
          %267 = dma.hbm_to_vmem [thread:$0]  %s1, 2048, %s262, [#allocation4], 256, 256, 16
        $region16: #{tpu_custom_call.1} parent=11 // pred_fallthru
          _
        // Predicated region
        $region17: #{tpu_custom_call.1} parent=11 // pred_check
          %p268 = pneg %p88
        $region18: #{tpu_custom_call.1} parent=11 // pred_check_branch
          %270 = sbr.rel (%p268) target = $region20
        $region19: #{tpu_custom_call.1} parent=11 // pred_region
          %s272 = ssub.s32 2048, 2048
          %273 = vsyncadd [#allocation7], %s272
          %s274 = sshll.u32 [#allocation6], 4
          %s275 = int_to_ptr.vmem [resolvable:$true] %s274
          %280 = dma.hbm_to_vmem [thread:$0]  %s2, 2048, %s275, [#allocation7], 128, 128, 8
        $region20: #{tpu_custom_call.1} parent=11 // pred_fallthru
          _
        // Predicated region
        $region21: #{tpu_custom_call.1} parent=11 // pred_check
          %p281 = pneg %p109
        $region22: #{tpu_custom_call.1} parent=11 // pred_check_branch
          %283 = sbr.rel (%p281) target = $region24
        $region23: #{tpu_custom_call.1} parent=11 // pred_region
          _
        $region24: #{tpu_custom_call.1} parent=11 // pred_fallthru
          _
        // Predicated region
        $region25: #{tpu_custom_call.1} parent=11 // pred_check
          %p284 = pneg %p130
        $region26: #{tpu_custom_call.1} parent=11 // pred_check_branch
          %286 = sbr.rel (%p284) target = $region28
        $region27: #{tpu_custom_call.1} parent=11 // pred_region
          _
        $region28: #{tpu_custom_call.1} parent=11 // pred_fallthru
          _
        // Predicated region
        $region29: #{tpu_custom_call.1} parent=11 // pred_check
          %p287 = pneg %p151
        $region30: #{tpu_custom_call.1} parent=11 // pred_check_branch
          %289 = sbr.rel (%p287) target = $region32
        $region31: #{tpu_custom_call.1} parent=11 // pred_region
          %s291 = ssub.s32 6144, 6144
          %292 = vsyncadd [#allocation7], %s291
          %s293 = sshll.u32 [#allocation8], 4
          %s294 = int_to_ptr.vmem [resolvable:$true] %s293
          %299 = dma.hbm_to_vmem [thread:$0]  %s5, 6144, %s294, [#allocation7], 128, 128, 8
        $region32: #{tpu_custom_call.1} parent=11 // pred_fallthru
          _
        // Predicated region
        $region33: #{tpu_custom_call.1} parent=11 // pred_check
          %p300 = pneg %p172
        $region34: #{tpu_custom_call.1} parent=11 // pred_check_branch
          %302 = sbr.rel (%p300) target = $region36
        $region35: #{tpu_custom_call.1} parent=11 // pred_region
          _
        $region36: #{tpu_custom_call.1} parent=11 // pred_fallthru
          _
        // Predicated region
        $region37: #{tpu_custom_call.1} parent=11 // pred_check
          %p303 = pneg %p193
        $region38: #{tpu_custom_call.1} parent=11 // pred_check_branch
          %305 = sbr.rel (%p303) target = $region40
        $region39: #{tpu_custom_call.1} parent=11 // pred_region
          _
        $region40: #{tpu_custom_call.1} parent=11 // pred_fallthru
          _
        // Predicated region
        $region41: #{tpu_custom_call.1} parent=11 // pred_check
          %p306 = pneg %p214
        $region42: #{tpu_custom_call.1} parent=11 // pred_check_branch
          %308 = sbr.rel (%p306) target = $region44
        $region43: #{tpu_custom_call.1} parent=11 // pred_region
          _
        $region44: #{tpu_custom_call.1} parent=11 // pred_fallthru
          _
      $region12: #{tpu_custom_call.1} parent=5 // pred_fallthru
        _
      %p309 = scmp.lt.s32.totalorder %s20, 2
      // Predicated region
      $region45: #{tpu_custom_call.1} parent=5 // pred_check
        %p310 = pneg %p309
      $region46: #{tpu_custom_call.1} parent=5 // pred_check_branch
        %312 = sbr.rel (%p310) target = $region48
      $region47: #{tpu_custom_call.1} parent=5 // pred_region
        // Predicated region
        $region49: #{tpu_custom_call.1} parent=47 // pred_check
          %p313 = pneg %p40
        $region50: #{tpu_custom_call.1} parent=47 // pred_check_branch
          %315 = sbr.rel (%p313) target = $region52
        $region51: #{tpu_custom_call.1} parent=47 // pred_region
          %p316 = scmp.lt.s32.totalorder %s20, 1
          %s317 = scalar_select %p316, %s20, 1
          %s318 = smul.addr %s317, 3
          %s319 = smul.addr %s318, 8
          %s320 = scalar_lea.vmem %s0, %s319
        $region52: #{tpu_custom_call.1} parent=47 // pred_fallthru
          _
      $region48: #{tpu_custom_call.1} parent=5 // pred_fallthru
        _
      %p321 = scmp.le.s32.totalorder 1, %s20
      %p322 = scmp.lt.s32.totalorder %s20, 3
      %p323 = pnand %p321, %p322
      %p324 = pneg %p323
      // Predicated region
      $region53: #{tpu_custom_call.1} parent=5 // pred_check
        _
      $region54: #{tpu_custom_call.1} parent=5 // pred_check_branch
        %326 = sbr.rel (%p323) target = $region56
      $region55: #{tpu_custom_call.1} parent=5 // pred_region
        %s327 = ssub.s32 %s20, 1
        // Predicated region
        $region57: #{tpu_custom_call.1} parent=55 // pred_check
          %p328 = pneg %p67
        $region58: #{tpu_custom_call.1} parent=55 // pred_check_branch
          %330 = sbr.rel (%p328) target = $region60
        $region59: #{tpu_custom_call.1} parent=55 // pred_region
          %331 = dma.done [#allocation4], 2048
        $region60: #{tpu_custom_call.1} parent=55 // pred_fallthru
          _
        // Predicated region
        $region61: #{tpu_custom_call.1} parent=55 // pred_check
          %p332 = pneg %p88
        $region62: #{tpu_custom_call.1} parent=55 // pred_check_branch
          %334 = sbr.rel (%p332) target = $region64
        $region63: #{tpu_custom_call.1} parent=55 // pred_region
          %335 = dma.done [#allocation7], 2048
        $region64: #{tpu_custom_call.1} parent=55 // pred_fallthru
          _
        // Predicated region
        $region65: #{tpu_custom_call.1} parent=55 // pred_check
          %p336 = pneg %p151
        $region66: #{tpu_custom_call.1} parent=55 // pred_check_branch
          %338 = sbr.rel (%p336) target = $region68
        $region67: #{tpu_custom_call.1} parent=55 // pred_region
          %339 = dma.done [#allocation7], 6144
        $region68: #{tpu_custom_call.1} parent=55 // pred_fallthru
          _
        %p340 = scmp.lt.s32.totalorder %s25, 1
        %s341 = scalar_select %p340, %s25, 1
        %s342 = smul.addr %s341, 3
        %s343 = smul.addr %s342, 8
        %s344 = scalar_lea.vmem %s0, %s343
        %p345 = pneg %p46
        %p346 = pneg %p43
        %p347 = pneg %p67
        %p348 = pneg %p64
        %p349 = pneg %p88
        %p350 = pneg %p85
        %p351 = pneg %p109
        %p352 = pneg %p106
        %p353 = pneg %p130
        %p354 = pneg %p127
        %p355 = pneg %p151
        %p356 = pneg %p148
        %p357 = pneg %p172
        %p358 = pneg %p169
        %p359 = pneg %p193
        %p360 = pneg %p190
        %p361 = pneg %p214
        %p362 = pneg %p211
        %p363 = pneg %p240
        %p364 = pneg %p237
        %s365 = sand.u32 %s227, 1
        %s366 = scalar_lea.sflag [#allocation5], %s365
        %s367 = sand.u32 %s227, 1
        %s368 = smul.addr %s367, 16
        %s369 = scalar_lea.vmem [#allocation9], %s368
        %p370 = scmp.lt.s32.totalorder %s25, 1
        %s371 = scalar_select %p370, %s25, 1
        %s372 = smul.addr %s371, 3
        %s373 = smul.addr %s372, 8
        %s374 = scalar_lea.vmem %s0, %s373
        %v375 = vld [vmem:[%s374 + $0x1] sm:$0xff]
        %v376 = vld [vmem:[%s374 + $0x9] sm:$0xff]
        %v377 = vld [vmem:[#allocation3] sm:$0xff]
        %v378 = vld [vmem:[#allocation3 + $0x8] sm:$0xff]
        %v379 = vld [vmem:[#allocation3 + $0x10] sm:$0xff]
        %v380 = vld [vmem:[#allocation3 + $0x18] sm:$0xff]
        %v381 = vld [vmem:[#allocation3 + $0x20] sm:$0xff]
        %v382 = vld [vmem:[#allocation3 + $0x28] sm:$0xff]
        %v383 = vld [vmem:[#allocation3 + $0x30] sm:$0xff]
        %v384 = vld [vmem:[#allocation3 + $0x38] sm:$0xff]
        %v385 = vld [vmem:[#allocation3 + $0x40] sm:$0xff]
        %v386 = vld [vmem:[#allocation3 + $0x48] sm:$0xff]
        %v387 = vld [vmem:[#allocation3 + $0x50] sm:$0xff]
        %v388 = vld [vmem:[#allocation3 + $0x58] sm:$0xff]
        %v389 = vld [vmem:[#allocation3 + $0x60] sm:$0xff]
        %v390 = vld [vmem:[#allocation3 + $0x68] sm:$0xff]
        %v391 = vld [vmem:[#allocation3 + $0x70] sm:$0xff]
        %v392 = vld [vmem:[#allocation3 + $0x78] sm:$0xff]
        %vm393 = vcmask 523264
        %v395 = vsel %vm393, %v375, 0
        %v398 = vsel %vm393, %v376, 0
        %400 = vmatprep.subr.mxu0 0.0
        %401 = vmatpush1.msra.mxu0 0.0
        %402 = vmatprep.subr.mxu0 0.0
        %403 = vmatpush1.msra.mxu0 0.0
        %404 = vmatprep.subr.mxu0 0.0
        %405 = vmatpush1.msra.mxu0 0.0
        %406 = vmatprep.subr.mxu0 0.0
        %407 = vmatpush1.msra.mxu0 0.0
        %408 = vmatprep.subr.mxu0 0.0
        %409 = vmatpush1.msra.mxu0 0.0
        %410 = vmatprep.subr.mxu0 0.0
        %411 = vmatpush1.msra.mxu0 0.0
        %412 = vmatprep.subr.mxu0 0.0
        %413 = vmatpush1.msra.mxu0 0.0
        %414 = vmatprep.subr.mxu0 0.0
        %415 = vmatpush1.msra.mxu0 0.0
        %416 = vmatprep.subr.mxu0 %v392
        %417 = vmatpush1.msra.mxu0 %v391
        %418 = vmatprep.subr.mxu0 %v390
        %419 = vmatpush1.msra.mxu0 %v389
        %420 = vmatprep.subr.mxu0 %v388
        %421 = vmatpush1.msra.mxu0 %v387
        %422 = vmatprep.subr.mxu0 %v386
        %423 = vmatpush1.msra.mxu0 %v385
        %424 = vmatprep.subr.mxu0 %v384
        %425 = vmatpush1.msra.mxu0 %v383
        %426 = vmatprep.subr.mxu0 %v382
        %427 = vmatpush1.msra.mxu0 %v381
        %428 = vmatprep.subr.mxu0 %v380
        %429 = vmatpush1.msra.mxu0 %v379
        %430 = vmatprep.subr.mxu0 %v378
        %431 = vmatpush1.msra.mxu0 %v377
        %432 = vmatprep.subr.mxu0 0.0
        %433 = vmatpush2.msra.mxu0 0.0
        %434 = vmatprep.subr.mxu0 0.0
        %435 = vmatpush2.msra.mxu0 0.0
        %436 = vmatprep.subr.mxu0 0.0
        %437 = vmatpush2.msra.mxu0 0.0
        %438 = vmatprep.subr.mxu0 0.0
        %439 = vmatpush2.msra.mxu0 0.0
        %440 = vmatprep.subr.mxu0 0.0
        %441 = vmatpush2.msra.mxu0 0.0
        %442 = vmatprep.subr.mxu0 0.0
        %443 = vmatpush2.msra.mxu0 0.0
        %444 = vmatprep.subr.mxu0 0.0
        %445 = vmatpush2.msra.mxu0 0.0
        %446 = vmatprep.subr.mxu0 0.0
        %447 = vmatpush2.msra.mxu0 0.0
        %448 = vmatprep.subr.mxu0 0.0
        %449 = vmatpush2.msra.mxu0 0.0
        %450 = vmatprep.subr.mxu0 0.0
        %451 = vmatpush2.msra.mxu0 0.0
        %452 = vmatprep.subr.mxu0 0.0
        %453 = vmatpush2.msra.mxu0 0.0
        %454 = vmatprep.subr.mxu0 0.0
        %455 = vmatpush2.msra.mxu0 0.0
        %456 = vmatprep.subr.mxu0 0.0
        %457 = vmatpush2.msra.mxu0 0.0
        %458 = vmatprep.subr.mxu0 0.0
        %459 = vmatpush2.msra.mxu0 0.0
        %460 = vmatprep.subr.mxu0 0.0
        %461 = vmatpush2.msra.mxu0 0.0
        %462 = vmatprep.subr.mxu0 0.0
        %463 = vmatpush2.msra.mxu0 0.0
        %464 = vmatprep.mubr.f32.mxu0 0.0
        %465 = vmatmul.mubr.f32.gmra.mxu0 %v395
        %v466 = vpop.f32.mrf.mxu0
        %v467 = vadd.f32 0.0, %v466
        %v468 = vpop.f32.mrf.mxu0
        %v469 = vadd.f32 0.0, %v468
        %470 = vmatprep.mubr.f32.mxu0 0.0
        %471 = vmatmul.mubr.f32.gmra.mxu0 %v398
        %v472 = vpop.f32.mrf.mxu0
        %v473 = vadd.f32 0.0, %v472
        %v474 = vpop.f32.mrf.mxu0
        %v475 = vadd.f32 0.0, %v474
        %476 = vdwg.mxu0
        %v477 = vld [vmem:[%s8] sm:$0x1]
        %v479 = vlaneseq
        %v480 = vshrl.u32 %v479, 7
        %v481 = vsub.s32 0, %v480
        %v482 = vrot.slane %v477, %v481
        %v484 = vadd.f32 %v469, %v482
        %v485 = vadd.f32 %v475, %v482
        %v486 = vld [vmem:[%s374] sm:$0xff]
        %v487 = vld [vmem:[%s374 + $0x8] sm:$0xff]
        %v488 = vld [vmem:[#allocation6] sm:$0xff]
        %v489 = vld [vmem:[#allocation6 + $0x8] sm:$0xff]
        %v490 = vld [vmem:[#allocation6 + $0x10] sm:$0xff]
        %v491 = vld [vmem:[#allocation6 + $0x18] sm:$0xff]
        %v492 = vld [vmem:[#allocation6 + $0x20] sm:$0xff]
        %v493 = vld [vmem:[#allocation6 + $0x28] sm:$0xff]
        %v494 = vld [vmem:[#allocation6 + $0x30] sm:$0xff]
        %v495 = vld [vmem:[#allocation6 + $0x38] sm:$0xff]
        %v497 = vsel %vm393, %v486, 0
        %v500 = vsel %vm393, %v487, 0
        %502 = vmatprep.subr.mxu0 0.0
        %503 = vmatpush1.msra.mxu0 0.0
        %504 = vmatprep.subr.mxu0 0.0
        %505 = vmatpush1.msra.mxu0 0.0
        %506 = vmatprep.subr.mxu0 0.0
        %507 = vmatpush1.msra.mxu0 0.0
        %508 = vmatprep.subr.mxu0 0.0
        %509 = vmatpush1.msra.mxu0 0.0
        %510 = vmatprep.subr.mxu0 0.0
        %511 = vmatpush1.msra.mxu0 0.0
        %512 = vmatprep.subr.mxu0 0.0
        %513 = vmatpush1.msra.mxu0 0.0
        %514 = vmatprep.subr.mxu0 0.0
        %515 = vmatpush1.msra.mxu0 0.0
        %516 = vmatprep.subr.mxu0 0.0
        %517 = vmatpush1.msra.mxu0 0.0
        %518 = vmatprep.subr.mxu0 0.0
        %519 = vmatpush1.msra.mxu0 %v495
        %520 = vmatprep.subr.mxu0 0.0
        %521 = vmatpush1.msra.mxu0 %v494
        %522 = vmatprep.subr.mxu0 0.0
        %523 = vmatpush1.msra.mxu0 %v493
        %524 = vmatprep.subr.mxu0 0.0
        %525 = vmatpush1.msra.mxu0 %v492
        %526 = vmatprep.subr.mxu0 0.0
        %527 = vmatpush1.msra.mxu0 %v491
        %528 = vmatprep.subr.mxu0 0.0
        %529 = vmatpush1.msra.mxu0 %v490
        %530 = vmatprep.subr.mxu0 0.0
        %531 = vmatpush1.msra.mxu0 %v489
        %532 = vmatprep.subr.mxu0 0.0
        %533 = vmatpush1.msra.mxu0 %v488
        %534 = vmatprep.subr.mxu0 0.0
        %535 = vmatpush2.msra.mxu0 0.0
        %536 = vmatprep.subr.mxu0 0.0
        %537 = vmatpush2.msra.mxu0 0.0
        %538 = vmatprep.subr.mxu0 0.0
        %539 = vmatpush2.msra.mxu0 0.0
        %540 = vmatprep.subr.mxu0 0.0
        %541 = vmatpush2.msra.mxu0 0.0
        %542 = vmatprep.subr.mxu0 0.0
        %543 = vmatpush2.msra.mxu0 0.0
        %544 = vmatprep.subr.mxu0 0.0
        %545 = vmatpush2.msra.mxu0 0.0
        %546 = vmatprep.subr.mxu0 0.0
        %547 = vmatpush2.msra.mxu0 0.0
        %548 = vmatprep.subr.mxu0 0.0
        %549 = vmatpush2.msra.mxu0 0.0
        %550 = vmatprep.subr.mxu0 0.0
        %551 = vmatpush2.msra.mxu0 0.0
        %552 = vmatprep.subr.mxu0 0.0
        %553 = vmatpush2.msra.mxu0 0.0
        %554 = vmatprep.subr.mxu0 0.0
        %555 = vmatpush2.msra.mxu0 0.0
        %556 = vmatprep.subr.mxu0 0.0
        %557 = vmatpush2.msra.mxu0 0.0
        %558 = vmatprep.subr.mxu0 0.0
        %559 = vmatpush2.msra.mxu0 0.0
        %560 = vmatprep.subr.mxu0 0.0
        %561 = vmatpush2.msra.mxu0 0.0
        %562 = vmatprep.subr.mxu0 0.0
        %563 = vmatpush2.msra.mxu0 0.0
        %564 = vmatprep.subr.mxu0 0.0
        %565 = vmatpush2.msra.mxu0 0.0
        %566 = vmatprep.mubr.f32.mxu0 0.0
        %567 = vmatmul.mubr.f32.gmra.mxu0 %v497
        %v568 = vpop.f32.mrf.mxu0
        %v569 = vadd.f32 0.0, %v568
        %v570 = vpop.f32.mrf.mxu0
        %571 = vmatprep.mubr.f32.mxu0 0.0
        %572 = vmatmul.mubr.f32.gmra.mxu0 %v500
        %v573 = vpop.f32.mrf.mxu0
        %v574 = vadd.f32 0.0, %v573
        %v575 = vpop.f32.mrf.mxu0
        %576 = vdwg.mxu0
        %v577 = vadd.f32 %v467, %v569
        %v578 = vadd.f32 %v473, %v574
        %v579 = vld [vmem:[%s374 + $0x2] sm:$0xff]
        %v580 = vld [vmem:[%s374 + $0xa] sm:$0xff]
        %s581 = scalar_lea.vmem [#allocation6], 64
        %v582 = vld [vmem:[%s581] sm:$0xff]
        %v583 = vld [vmem:[%s581 + $0x8] sm:$0xff]
        %v584 = vld [vmem:[%s581 + $0x10] sm:$0xff]
        %v585 = vld [vmem:[%s581 + $0x18] sm:$0xff]
        %v586 = vld [vmem:[%s581 + $0x20] sm:$0xff]
        %v587 = vld [vmem:[%s581 + $0x28] sm:$0xff]
        %v588 = vld [vmem:[%s581 + $0x30] sm:$0xff]
        %v589 = vld [vmem:[%s581 + $0x38] sm:$0xff]
        %v591 = vsel %vm393, %v579, 0
        %v594 = vsel %vm393, %v580, 0
        %596 = vmatprep.subr.mxu0 0.0
        %597 = vmatpush1.msra.mxu0 0.0
        %598 = vmatprep.subr.mxu0 0.0
        %599 = vmatpush1.msra.mxu0 0.0
        %600 = vmatprep.subr.mxu0 0.0
        %601 = vmatpush1.msra.mxu0 0.0
        %602 = vmatprep.subr.mxu0 0.0
        %603 = vmatpush1.msra.mxu0 0.0
        %604 = vmatprep.subr.mxu0 0.0
        %605 = vmatpush1.msra.mxu0 0.0
        %606 = vmatprep.subr.mxu0 0.0
        %607 = vmatpush1.msra.mxu0 0.0
        %608 = vmatprep.subr.mxu0 0.0
        %609 = vmatpush1.msra.mxu0 0.0
        %610 = vmatprep.subr.mxu0 0.0
        %611 = vmatpush1.msra.mxu0 0.0
        %612 = vmatprep.subr.mxu0 0.0
        %613 = vmatpush1.msra.mxu0 %v589
        %614 = vmatprep.subr.mxu0 0.0
        %615 = vmatpush1.msra.mxu0 %v588
        %616 = vmatprep.subr.mxu0 0.0
        %617 = vmatpush1.msra.mxu0 %v587
        %618 = vmatprep.subr.mxu0 0.0
        %619 = vmatpush1.msra.mxu0 %v586
        %620 = vmatprep.subr.mxu0 0.0
        %621 = vmatpush1.msra.mxu0 %v585
        %622 = vmatprep.subr.mxu0 0.0
        %623 = vmatpush1.msra.mxu0 %v584
        %624 = vmatprep.subr.mxu0 0.0
        %625 = vmatpush1.msra.mxu0 %v583
        %626 = vmatprep.subr.mxu0 0.0
        %627 = vmatpush1.msra.mxu0 %v582
        %628 = vmatprep.subr.mxu0 0.0
        %629 = vmatpush2.msra.mxu0 0.0
        %630 = vmatprep.subr.mxu0 0.0
        %631 = vmatpush2.msra.mxu0 0.0
        %632 = vmatprep.subr.mxu0 0.0
        %633 = vmatpush2.msra.mxu0 0.0
        %634 = vmatprep.subr.mxu0 0.0
        %635 = vmatpush2.msra.mxu0 0.0
        %636 = vmatprep.subr.mxu0 0.0
        %637 = vmatpush2.msra.mxu0 0.0
        %638 = vmatprep.subr.mxu0 0.0
        %639 = vmatpush2.msra.mxu0 0.0
        %640 = vmatprep.subr.mxu0 0.0
        %641 = vmatpush2.msra.mxu0 0.0
        %642 = vmatprep.subr.mxu0 0.0
        %643 = vmatpush2.msra.mxu0 0.0
        %644 = vmatprep.subr.mxu0 0.0
        %645 = vmatpush2.msra.mxu0 0.0
        %646 = vmatprep.subr.mxu0 0.0
        %647 = vmatpush2.msra.mxu0 0.0
        %648 = vmatprep.subr.mxu0 0.0
        %649 = vmatpush2.msra.mxu0 0.0
        %650 = vmatprep.subr.mxu0 0.0
        %651 = vmatpush2.msra.mxu0 0.0
        %652 = vmatprep.subr.mxu0 0.0
        %653 = vmatpush2.msra.mxu0 0.0
        %654 = vmatprep.subr.mxu0 0.0
        %655 = vmatpush2.msra.mxu0 0.0
        %656 = vmatprep.subr.mxu0 0.0
        %657 = vmatpush2.msra.mxu0 0.0
        %658 = vmatprep.subr.mxu0 0.0
        %659 = vmatpush2.msra.mxu0 0.0
        %660 = vmatprep.mubr.f32.mxu0 0.0
        %661 = vmatmul.mubr.f32.gmra.mxu0 %v591
        %v662 = vpop.f32.mrf.mxu0
        %v663 = vadd.f32 0.0, %v662
        %v664 = vpop.f32.mrf.mxu0
        %665 = vmatprep.mubr.f32.mxu0 0.0
        %666 = vmatmul.mubr.f32.gmra.mxu0 %v594
        %v667 = vpop.f32.mrf.mxu0
        %v668 = vadd.f32 0.0, %v667
        %v669 = vpop.f32.mrf.mxu0
        %670 = vdwg.mxu0
        %v671 = vadd.f32 %v577, %v663
        %v672 = vadd.f32 %v578, %v668
        %v673 = vld [vmem:[%s3] sm:$0x1]
        %v675 = vlaneseq
        %v676 = vshrl.u32 %v675, 7
        %v677 = vsub.s32 0, %v676
        %v678 = vrot.slane %v673, %v677
        %v680 = vmul.f32 %v671, %v678
        %v681 = vmul.f32 %v672, %v678
        %v682 = vld [vmem:[%s4] sm:$0x1]
        %v684 = vlaneseq
        %v685 = vshrl.u32 %v684, 7
        %v686 = vsub.s32 0, %v685
        %v687 = vrot.slane %v682, %v686
        %v689 = vadd.f32 %v680, %v687
        %v690 = vadd.f32 %v681, %v687
        %v691 = vmax.f32 %v689, 0.0
        %v692 = vmax.f32 %v690, 0.0
        %693 = vst [vmem:[#allocation2] sm:$0x1] 0.0
        %694 = vst [vmem:[#allocation2 + $0x11] sm:$0x1] 0.0
        %695 = vst [vmem:[#allocation2 + $0x1] sm:$0xff] %v691
        %696 = vst [vmem:[#allocation2 + $0x9] sm:$0xff] %v692
        %v697 = vld [vmem:[#allocation2] sm:$0xff]
        %v698 = vld [vmem:[#allocation2 + $0x8] sm:$0xff]
        %v699 = vld [vmem:[#allocation8] sm:$0xff]
        %v700 = vld [vmem:[#allocation8 + $0x8] sm:$0xff]
        %v701 = vld [vmem:[#allocation8 + $0x10] sm:$0xff]
        %v702 = vld [vmem:[#allocation8 + $0x18] sm:$0xff]
        %v703 = vld [vmem:[#allocation8 + $0x20] sm:$0xff]
        %v704 = vld [vmem:[#allocation8 + $0x28] sm:$0xff]
        %v705 = vld [vmem:[#allocation8 + $0x30] sm:$0xff]
        %v706 = vld [vmem:[#allocation8 + $0x38] sm:$0xff]
        %v707 = vld [vmem:[#allocation8 + $0x40] sm:$0xff]
        %v708 = vld [vmem:[#allocation8 + $0x48] sm:$0xff]
        %v709 = vld [vmem:[#allocation8 + $0x50] sm:$0xff]
        %v710 = vld [vmem:[#allocation8 + $0x58] sm:$0xff]
        %v711 = vld [vmem:[#allocation8 + $0x60] sm:$0xff]
        %v712 = vld [vmem:[#allocation8 + $0x68] sm:$0xff]
        %v713 = vld [vmem:[#allocation8 + $0x70] sm:$0xff]
        %v714 = vld [vmem:[#allocation8 + $0x78] sm:$0xff]
        %s715 = scalar_lea.vmem [#allocation8], 128
        %v716 = vld [vmem:[%s715] sm:$0xff]
        %v717 = vld [vmem:[%s715 + $0x8] sm:$0xff]
        %v718 = vld [vmem:[%s715 + $0x10] sm:$0xff]
        %v719 = vld [vmem:[%s715 + $0x18] sm:$0xff]
        %v720 = vld [vmem:[%s715 + $0x20] sm:$0xff]
        %v721 = vld [vmem:[%s715 + $0x28] sm:$0xff]
        %v722 = vld [vmem:[%s715 + $0x30] sm:$0xff]
        %v723 = vld [vmem:[%s715 + $0x38] sm:$0xff]
        %v724 = vld [vmem:[%s715 + $0x40] sm:$0xff]
        %v725 = vld [vmem:[%s715 + $0x48] sm:$0xff]
        %v726 = vld [vmem:[%s715 + $0x50] sm:$0xff]
        %v727 = vld [vmem:[%s715 + $0x58] sm:$0xff]
        %v728 = vld [vmem:[%s715 + $0x60] sm:$0xff]
        %v729 = vld [vmem:[%s715 + $0x68] sm:$0xff]
        %v730 = vld [vmem:[%s715 + $0x70] sm:$0xff]
        %v731 = vld [vmem:[%s715 + $0x78] sm:$0xff]
        %732 = vmatprep.subr.mxu0 0.0
        %733 = vmatpush1.msra.mxu0 %v731
        %734 = vmatprep.subr.mxu0 0.0
        %735 = vmatpush1.msra.mxu0 %v730
        %736 = vmatprep.subr.mxu0 0.0
        %737 = vmatpush1.msra.mxu0 %v729
        %738 = vmatprep.subr.mxu0 0.0
        %739 = vmatpush1.msra.mxu0 %v728
        %740 = vmatprep.subr.mxu0 0.0
        %741 = vmatpush1.msra.mxu0 %v727
        %742 = vmatprep.subr.mxu0 0.0
        %743 = vmatpush1.msra.mxu0 %v726
        %744 = vmatprep.subr.mxu0 0.0
        %745 = vmatpush1.msra.mxu0 %v725
        %746 = vmatprep.subr.mxu0 0.0
        %747 = vmatpush1.msra.mxu0 %v724
        %748 = vmatprep.subr.mxu0 0.0
        %749 = vmatpush1.msra.mxu0 %v723
        %750 = vmatprep.subr.mxu0 0.0
        %751 = vmatpush1.msra.mxu0 %v722
        %752 = vmatprep.subr.mxu0 0.0
        %753 = vmatpush1.msra.mxu0 %v721
        %754 = vmatprep.subr.mxu0 0.0
        %755 = vmatpush1.msra.mxu0 %v720
        %756 = vmatprep.subr.mxu0 0.0
        %757 = vmatpush1.msra.mxu0 %v719
        %758 = vmatprep.subr.mxu0 0.0
        %759 = vmatpush1.msra.mxu0 %v718
        %760 = vmatprep.subr.mxu0 0.0
        %761 = vmatpush1.msra.mxu0 %v717
        %762 = vmatprep.subr.mxu0 0.0
        %763 = vmatpush1.msra.mxu0 %v716
        %764 = vmatprep.subr.mxu0 0.0
        %765 = vmatpush2.msra.mxu0 0.0
        %766 = vmatprep.subr.mxu0 0.0
        %767 = vmatpush2.msra.mxu0 0.0
        %768 = vmatprep.subr.mxu0 0.0
        %769 = vmatpush2.msra.mxu0 0.0
        %770 = vmatprep.subr.mxu0 0.0
        %771 = vmatpush2.msra.mxu0 0.0
        %772 = vmatprep.subr.mxu0 0.0
        %773 = vmatpush2.msra.mxu0 0.0
        %774 = vmatprep.subr.mxu0 0.0
        %775 = vmatpush2.msra.mxu0 0.0
        %776 = vmatprep.subr.mxu0 0.0
        %777 = vmatpush2.msra.mxu0 0.0
        %778 = vmatprep.subr.mxu0 0.0
        %779 = vmatpush2.msra.mxu0 0.0
        %780 = vmatprep.subr.mxu0 0.0
        %781 = vmatpush2.msra.mxu0 0.0
        %782 = vmatprep.subr.mxu0 0.0
        %783 = vmatpush2.msra.mxu0 0.0
        %784 = vmatprep.subr.mxu0 0.0
        %785 = vmatpush2.msra.mxu0 0.0
        %786 = vmatprep.subr.mxu0 0.0
        %787 = vmatpush2.msra.mxu0 0.0
        %788 = vmatprep.subr.mxu0 0.0
        %789 = vmatpush2.msra.mxu0 0.0
        %790 = vmatprep.subr.mxu0 0.0
        %791 = vmatpush2.msra.mxu0 0.0
        %792 = vmatprep.subr.mxu0 0.0
        %793 = vmatpush2.msra.mxu0 0.0
        %794 = vmatprep.subr.mxu0 0.0
        %795 = vmatpush2.msra.mxu0 0.0
        %796 = vmatprep.mubr.f32.mxu0 0.0
        %797 = vmatmul.mubr.f32.gmra.mxu0 %v691
        %v798 = vpop.f32.mrf.mxu0
        %v799 = vadd.f32 0.0, %v798
        %v800 = vpop.f32.mrf.mxu0
        %801 = vmatprep.mubr.f32.mxu0 0.0
        %802 = vmatmul.mubr.f32.gmra.mxu0 %v692
        %v803 = vpop.f32.mrf.mxu0
        %v804 = vadd.f32 0.0, %v803
        %v805 = vpop.f32.mrf.mxu0
        %806 = vdwg.mxu0
        %807 = vmatprep.subr.mxu0 0.0
        %808 = vmatpush1.msra.mxu0 %v714
        %809 = vmatprep.subr.mxu0 0.0
        %810 = vmatpush1.msra.mxu0 %v713
        %811 = vmatprep.subr.mxu0 0.0
        %812 = vmatpush1.msra.mxu0 %v712
        %813 = vmatprep.subr.mxu0 0.0
        %814 = vmatpush1.msra.mxu0 %v711
        %815 = vmatprep.subr.mxu0 0.0
        %816 = vmatpush1.msra.mxu0 %v710
        %817 = vmatprep.subr.mxu0 0.0
        %818 = vmatpush1.msra.mxu0 %v709
        %819 = vmatprep.subr.mxu0 0.0
        %820 = vmatpush1.msra.mxu0 %v708
        %821 = vmatprep.subr.mxu0 0.0
        %822 = vmatpush1.msra.mxu0 %v707
        %823 = vmatprep.subr.mxu0 0.0
        %824 = vmatpush1.msra.mxu0 %v706
        %825 = vmatprep.subr.mxu0 0.0
        %826 = vmatpush1.msra.mxu0 %v705
        %827 = vmatprep.subr.mxu0 0.0
        %828 = vmatpush1.msra.mxu0 %v704
        %829 = vmatprep.subr.mxu0 0.0
        %830 = vmatpush1.msra.mxu0 %v703
        %831 = vmatprep.subr.mxu0 0.0
        %832 = vmatpush1.msra.mxu0 %v702
        %833 = vmatprep.subr.mxu0 0.0
        %834 = vmatpush1.msra.mxu0 %v701
        %835 = vmatprep.subr.mxu0 0.0
        %836 = vmatpush1.msra.mxu0 %v700
        %837 = vmatprep.subr.mxu0 0.0
        %838 = vmatpush1.msra.mxu0 %v699
        %839 = vmatprep.subr.mxu0 0.0
        %840 = vmatpush2.msra.mxu0 0.0
        %841 = vmatprep.subr.mxu0 0.0
        %842 = vmatpush2.msra.mxu0 0.0
        %843 = vmatprep.subr.mxu0 0.0
        %844 = vmatpush2.msra.mxu0 0.0
        %845 = vmatprep.subr.mxu0 0.0
        %846 = vmatpush2.msra.mxu0 0.0
        %847 = vmatprep.subr.mxu0 0.0
        %848 = vmatpush2.msra.mxu0 0.0
        %849 = vmatprep.subr.mxu0 0.0
        %850 = vmatpush2.msra.mxu0 0.0
        %851 = vmatprep.subr.mxu0 0.0
        %852 = vmatpush2.msra.mxu0 0.0
        %853 = vmatprep.subr.mxu0 0.0
        %854 = vmatpush2.msra.mxu0 0.0
        %855 = vmatprep.subr.mxu0 0.0
        %856 = vmatpush2.msra.mxu0 0.0
        %857 = vmatprep.subr.mxu0 0.0
        %858 = vmatpush2.msra.mxu0 0.0
        %859 = vmatprep.subr.mxu0 0.0
        %860 = vmatpush2.msra.mxu0 0.0
        %861 = vmatprep.subr.mxu0 0.0
        %862 = vmatpush2.msra.mxu0 0.0
        %863 = vmatprep.subr.mxu0 0.0
        %864 = vmatpush2.msra.mxu0 0.0
        %865 = vmatprep.subr.mxu0 0.0
        %866 = vmatpush2.msra.mxu0 0.0
        %867 = vmatprep.subr.mxu0 0.0
        %868 = vmatpush2.msra.mxu0 0.0
        %869 = vmatprep.subr.mxu0 0.0
        %870 = vmatpush2.msra.mxu0 0.0
        %871 = vmatprep.mubr.f32.mxu0 0.0
        %872 = vmatmul.mubr.f32.gmra.mxu0 %v697
        %v873 = vpop.f32.mrf.mxu0
        %v874 = vadd.f32 %v799, %v873
        %v875 = vpop.f32.mrf.mxu0
        %876 = vmatprep.mubr.f32.mxu0 0.0
        %877 = vmatmul.mubr.f32.gmra.mxu0 %v698
        %v878 = vpop.f32.mrf.mxu0
        %v879 = vadd.f32 %v804, %v878
        %v880 = vpop.f32.mrf.mxu0
        %881 = vdwg.mxu0
        %v882 = vld [vmem:[#allocation2 + $0x2] sm:$0xff]
        %v883 = vld [vmem:[#allocation2 + $0xa] sm:$0xff]
        %s884 = scalar_lea.vmem [#allocation8], 256
        %v885 = vld [vmem:[%s884] sm:$0xff]
        %v886 = vld [vmem:[%s884 + $0x8] sm:$0xff]
        %v887 = vld [vmem:[%s884 + $0x10] sm:$0xff]
        %v888 = vld [vmem:[%s884 + $0x18] sm:$0xff]
        %v889 = vld [vmem:[%s884 + $0x20] sm:$0xff]
        %v890 = vld [vmem:[%s884 + $0x28] sm:$0xff]
        %v891 = vld [vmem:[%s884 + $0x30] sm:$0xff]
        %v892 = vld [vmem:[%s884 + $0x38] sm:$0xff]
        %v893 = vld [vmem:[%s884 + $0x40] sm:$0xff]
        %v894 = vld [vmem:[%s884 + $0x48] sm:$0xff]
        %v895 = vld [vmem:[%s884 + $0x50] sm:$0xff]
        %v896 = vld [vmem:[%s884 + $0x58] sm:$0xff]
        %v897 = vld [vmem:[%s884 + $0x60] sm:$0xff]
        %v898 = vld [vmem:[%s884 + $0x68] sm:$0xff]
        %v899 = vld [vmem:[%s884 + $0x70] sm:$0xff]
        %v900 = vld [vmem:[%s884 + $0x78] sm:$0xff]
        %901 = vmatprep.subr.mxu0 0.0
        %902 = vmatpush1.msra.mxu0 %v900
        %903 = vmatprep.subr.mxu0 0.0
        %904 = vmatpush1.msra.mxu0 %v899
        %905 = vmatprep.subr.mxu0 0.0
        %906 = vmatpush1.msra.mxu0 %v898
        %907 = vmatprep.subr.mxu0 0.0
        %908 = vmatpush1.msra.mxu0 %v897
        %909 = vmatprep.subr.mxu0 0.0
        %910 = vmatpush1.msra.mxu0 %v896
        %911 = vmatprep.subr.mxu0 0.0
        %912 = vmatpush1.msra.mxu0 %v895
        %913 = vmatprep.subr.mxu0 0.0
        %914 = vmatpush1.msra.mxu0 %v894
        %915 = vmatprep.subr.mxu0 0.0
        %916 = vmatpush1.msra.mxu0 %v893
        %917 = vmatprep.subr.mxu0 0.0
        %918 = vmatpush1.msra.mxu0 %v892
        %919 = vmatprep.subr.mxu0 0.0
        %920 = vmatpush1.msra.mxu0 %v891
        %921 = vmatprep.subr.mxu0 0.0
        %922 = vmatpush1.msra.mxu0 %v890
        %923 = vmatprep.subr.mxu0 0.0
        %924 = vmatpush1.msra.mxu0 %v889
        %925 = vmatprep.subr.mxu0 0.0
        %926 = vmatpush1.msra.mxu0 %v888
        %927 = vmatprep.subr.mxu0 0.0
        %928 = vmatpush1.msra.mxu0 %v887
        %929 = vmatprep.subr.mxu0 0.0
        %930 = vmatpush1.msra.mxu0 %v886
        %931 = vmatprep.subr.mxu0 0.0
        %932 = vmatpush1.msra.mxu0 %v885
        %933 = vmatprep.subr.mxu0 0.0
        %934 = vmatpush2.msra.mxu0 0.0
        %935 = vmatprep.subr.mxu0 0.0
        %936 = vmatpush2.msra.mxu0 0.0
        %937 = vmatprep.subr.mxu0 0.0
        %938 = vmatpush2.msra.mxu0 0.0
        %939 = vmatprep.subr.mxu0 0.0
        %940 = vmatpush2.msra.mxu0 0.0
        %941 = vmatprep.subr.mxu0 0.0
        %942 = vmatpush2.msra.mxu0 0.0
        %943 = vmatprep.subr.mxu0 0.0
        %944 = vmatpush2.msra.mxu0 0.0
        %945 = vmatprep.subr.mxu0 0.0
        %946 = vmatpush2.msra.mxu0 0.0
        %947 = vmatprep.subr.mxu0 0.0
        %948 = vmatpush2.msra.mxu0 0.0
        %949 = vmatprep.subr.mxu0 0.0
        %950 = vmatpush2.msra.mxu0 0.0
        %951 = vmatprep.subr.mxu0 0.0
        %952 = vmatpush2.msra.mxu0 0.0
        %953 = vmatprep.subr.mxu0 0.0
        %954 = vmatpush2.msra.mxu0 0.0
        %955 = vmatprep.subr.mxu0 0.0
        %956 = vmatpush2.msra.mxu0 0.0
        %957 = vmatprep.subr.mxu0 0.0
        %958 = vmatpush2.msra.mxu0 0.0
        %959 = vmatprep.subr.mxu0 0.0
        %960 = vmatpush2.msra.mxu0 0.0
        %961 = vmatprep.subr.mxu0 0.0
        %962 = vmatpush2.msra.mxu0 0.0
        %963 = vmatprep.subr.mxu0 0.0
        %964 = vmatpush2.msra.mxu0 0.0
        %965 = vmatprep.mubr.f32.mxu0 0.0
        %966 = vmatmul.mubr.f32.gmra.mxu0 %v882
        %v967 = vpop.f32.mrf.mxu0
        %v968 = vadd.f32 0.0, %v967
        %v969 = vpop.f32.mrf.mxu0
        %970 = vmatprep.mubr.f32.mxu0 0.0
        %971 = vmatmul.mubr.f32.gmra.mxu0 %v883
        %v972 = vpop.f32.mrf.mxu0
        %v973 = vadd.f32 0.0, %v972
        %v974 = vpop.f32.mrf.mxu0
        %975 = vdwg.mxu0
        %v976 = vadd.f32 %v874, %v968
        %v977 = vadd.f32 %v879, %v973
        %v978 = vld [vmem:[%s6] sm:$0x1]
        %v980 = vlaneseq
        %v981 = vshrl.u32 %v980, 7
        %v982 = vsub.s32 0, %v981
        %v983 = vrot.slane %v978, %v982
        %v985 = vmul.f32 %v976, %v983
        %v986 = vmul.f32 %v977, %v983
        %v987 = vld [vmem:[%s7] sm:$0x1]
        %v989 = vlaneseq
        %v990 = vshrl.u32 %v989, 7
        %v991 = vsub.s32 0, %v990
        %v992 = vrot.slane %v987, %v991
        %v994 = vadd.f32 %v985, %v992
        %v995 = vadd.f32 %v986, %v992
        %v996 = vmax.f32 %v994, 0.0
        %v997 = vmax.f32 %v995, 0.0
        %v998 = vadd.f32 %v996, %v484
        %v999 = vadd.f32 %v997, %v485
        %v1000 = vmax.f32 %v998, 0.0
        %v1001 = vmax.f32 %v999, 0.0
        %1002 = vst [vmem:[%s369] sm:$0xff] %v1000
        %1003 = vst [vmem:[%s369 + $0x8] sm:$0xff] %v1001
        %s1004 = sand.u32 %s227, 1
        %s1005 = scalar_lea.sflag [#allocation5], %s1004
        %s1006 = sand.u32 %s227, 1
        %s1007 = smul.addr %s1006, 16
        %s1008 = scalar_lea.vmem [#allocation9], %s1007
        // Predicated region
        $region69: #{tpu_custom_call.1} parent=55 // pred_check
          %p1009 = pneg %p237
        $region70: #{tpu_custom_call.1} parent=55 // pred_check_branch
          %1011 = sbr.rel (%p1009) target = $region72
        $region71: #{tpu_custom_call.1} parent=55 // pred_region
          %s1013 = ssub.s32 256, 256
          %1014 = vsyncadd %s1005, %s1013
          %s1015 = smul.addr %s25, 2
          %s1016 = smul.addr %s1015, 128
          %s1017 = scalar_lea.hbm %s9, %s1016
          %s1018 = sshll.u32 %s1008, 4
          %s1019 = int_to_ptr.vmem [resolvable:$true] %s1018
          %1024 = dma.vmem_to_hbm [thread:$0]  %s1019, 256, %s1017, %s1005, 128, 128, 8
        $region72: #{tpu_custom_call.1} parent=55 // pred_fallthru
          _
      $region56: #{tpu_custom_call.1} parent=5 // pred_fallthru
        _
      %p1025 = scmp.le.s32.totalorder 2, %s20
      // Predicated region
      $region73: #{tpu_custom_call.1} parent=5 // pred_check
        %p1026 = pneg %p1025
      $region74: #{tpu_custom_call.1} parent=5 // pred_check_branch
        %1028 = sbr.rel (%p1026) target = $region76
      $region75: #{tpu_custom_call.1} parent=5 // pred_region
        %s1029 = ssub.s32 %s20, 2
        // Predicated region
        $region77: #{tpu_custom_call.1} parent=75 // pred_check
          %p1030 = pneg %p243
        $region78: #{tpu_custom_call.1} parent=75 // pred_check_branch
          %1032 = sbr.rel (%p1030) target = $region80
        $region79: #{tpu_custom_call.1} parent=75 // pred_region
          %s1033 = sand.u32 %s228, 1
          %s1034 = scalar_lea.sflag [#allocation5], %s1033
          %s1035 = sand.u32 %s228, 1
          %s1036 = smul.addr %s1035, 16
          %s1037 = scalar_lea.vmem [#allocation9], %s1036
          %1038 = dma.done %s1034, 256
        $region80: #{tpu_custom_call.1} parent=75 // pred_fallthru
          _
      $region76: #{tpu_custom_call.1} parent=5 // pred_fallthru
        _
    $region6: #{tpu_custom_call.1} parent=1 // loop_footer
      %s24 = sadd.s32 1, %s20
    $region7: #{tpu_custom_call.1} parent=1 // loop_footer_branch
      %19 = sbr.rel target = $region3
    $region8: #{tpu_custom_call.1} parent=1 // loop_exit
      _
    %1039 = vsyncpa [#allocation4], 1
    %s1040 = scalar_lea.sflag [#allocation4], 1
    %1041 = vsyncpa %s1040, 1
    %1042 = vsyncpa [#allocation7], 1
    %1043 = vsyncpa [#allocation5], 1
    %s1044 = scalar_lea.sflag [#allocation5], 1
    %1045 = vsyncpa %s1044, 1

</llo_original>
